<compile_context>
chip_gen: v6e
topology: v6e:2x2x1
jax: 0.10.0
libtpu: 0.0.40
codegen_flags: <defaults>
</compile_context>

<pallas_src>
import functools

import jax
import jax.numpy as jnp
from jax.experimental import pallas as pl
from jax.experimental.pallas import tpu as pltpu

LN_EPS = 1e-5  # nn.LayerNorm default


# ---------------------------------------------------------------------------
# Compare-exchange network that places the lower median (sorted index (n-1)//2)
# at a fixed position.  Built once per N at trace time (pure Python).
# ---------------------------------------------------------------------------
def _batcher_pairs(n):
    """Batcher odd-even mergesort comparator list (valid for any n)."""
    pairs = []
    p = 1
    while p < n:
        k = p
        while k >= 1:
            for j in range(k % p, n - k, 2 * k):
                for i in range(min(k, n - j - k)):
                    if (i + j) // (2 * p) == (i + j + k) // (2 * p):
                        pairs.append((i + j, i + j + k))
            k //= 2
        p *= 2
    return pairs


def _brick_pairs(n):
    """Odd-even transposition sort (fallback; trivially correct)."""
    pairs = []
    for r in range(n):
        for i in range(r % 2, n - 1, 2):
            pairs.append((i, i + 1))
    return pairs


def _prune_to_position(pairs, k):
    """Drop comparators that cannot influence the final value at position k."""
    needed = {k}
    kept = []
    for (a, b) in reversed(pairs):
        if a in needed or b in needed:
            kept.append((a, b))
            needed.add(a)
            needed.add(b)
    kept.reverse()
    return tuple(kept)


def _selects_kth(pairs, n, k):
    """Zero-one-principle check: network puts the k-th smallest at slot k."""
    for m in range(1 << n):
        v = [(m >> i) & 1 for i in range(n)]
        ref = sorted(v)[k]
        for (a, b) in pairs:
            if v[a] > v[b]:
                v[a], v[b] = v[b], v[a]
        if v[k] != ref:
            return False
    return True


def _lower_median_network(n):
    k = (n - 1) // 2  # torch.median returns the LOWER median
    pairs = _prune_to_position(_batcher_pairs(n), k)
    if n <= 12 and not _selects_kth(pairs, n, k):
        pairs = _prune_to_position(_brick_pairs(n), k)  # safe fallback
    return pairs, k


# ---------------------------------------------------------------------------
# Kernel
# ---------------------------------------------------------------------------
def _median_classifier_kernel(x_ref, gamma_ref, beta_ref, w_ref, b_ref, out_ref,
                              *, comparators, med_idx):
    # x_ref:     (N, Btile, F)  input block (native dtype, upcast below)
    # gamma_ref: (1, F)   beta_ref: (1, F)
    # w_ref:     (F, Cpad)   b_ref: (1, Cpad)
    # out_ref:   (Btile, Cpad)
    n, bt, f = x_ref.shape

    gamma = gamma_ref[...]
    beta = beta_ref[...]
    w = w_ref[...]
    bias = b_ref[...]

    # Sub-chunk the Btile rows so the N live slices of the selection network stay
    # close to the 64-vreg file even when the DMA block is large.
    budget_bytes = 256 * 1024
    chunk = budget_bytes // (n * f * 4)
    chunk = max(8, min(bt, (chunk // 8) * 8))

    for c0 in range(0, bt, chunk):
        rows = min(chunk, bt - c0)
        # Contiguous slabs along the leading (untiled) axis -> no sublane striding.
        vals = [x_ref[i, pl.ds(c0, rows), :].astype(jnp.float32) for i in range(n)]

        # Min/max selection network: position `med_idx` ends up holding the
        # lower median (same value torch.median returns; ties share a value).
        for (p, q) in comparators:
            lo = jnp.minimum(vals[p], vals[q])
            hi = jnp.maximum(vals[p], vals[q])
            vals[p] = lo
            vals[q] = hi
        med = vals[med_idx]

        # LayerNorm over F (population variance, eps inside rsqrt).
        mean = jnp.mean(med, axis=-1, keepdims=True)
        cen = med - mean
        var = jnp.mean(cen * cen, axis=-1, keepdims=True)
        normed = cen * jax.lax.rsqrt(var + LN_EPS) * gamma + beta

        # Linear F -> Cpad (lane-dense store).
        out_ref[pl.ds(c0, rows), :] = (
            jnp.dot(normed, w, preferred_element_type=jnp.float32) + bias
        )


# ---------------------------------------------------------------------------
# Wrapper
# ---------------------------------------------------------------------------
def median_classifier(x, gamma, beta, w, b, *, b_tile=None):
    """x: (B, N, F) float (f32 or bf16); gamma/beta: (F,); w: (F, C); b: (C,).

    Returns (B, C) f32, matching MedianClassifier.forward.
    """
    B, N, F = x.shape
    C = w.shape[1]
    itemsize = x.dtype.itemsize

    # --- batch tiling ---------------------------------------------------------
    B8 = ((B + 7) // 8) * 8
    if b_tile is None:
        if B8 <= 256:
            b_tile = B8
        else:
            b_tile = min(1024, (B8 // 256) * 256)
            # Keep one double-buffered x block <= ~4 MiB per buffer.
            max_rows = max(256, ((4 << 20) // (N * F * itemsize) // 256) * 256)
            b_tile = min(b_tile, max_rows)
    B_pad = pl.cdiv(B, b_tile) * b_tile
    grid = (B_pad // b_tile,)

    # --- lane-dense output padding --------------------------------------------
    C_pad = pl.cdiv(C, 128) * 128

    # --- operand prep (cheap, wrapper-side) ------------------------------------
    # (N, B, F) layout so the kernel reads contiguous (rows, F) slabs per position.
    x_t = jnp.transpose(x, (1, 0, 2))
    if B_pad != B:
        x_t = jnp.pad(x_t, ((0, 0), (0, B_pad - B), (0, 0)))
    gamma2 = gamma.reshape(1, F).astype(jnp.float32)
    beta2 = beta.reshape(1, F).astype(jnp.float32)
    w_pad = jnp.pad(w.astype(jnp.float32), ((0, 0), (0, C_pad - C)))
    b_pad = jnp.pad(b.astype(jnp.float32), (0, C_pad - C)).reshape(1, C_pad)

    comparators, med_idx = _lower_median_network(N)
    kernel = functools.partial(
        _median_classifier_kernel, comparators=comparators, med_idx=med_idx)

    out_pad = pl.pallas_call(
        kernel,
        out_shape=jax.ShapeDtypeStruct((B_pad, C_pad), jnp.float32),
        grid=grid,
        in_specs=[
            pl.BlockSpec((N, b_tile, F), lambda g: (0, g, 0)),
            pl.BlockSpec((1, F), lambda g: (0, 0)),       # gamma: resident
            pl.BlockSpec((1, F), lambda g: (0, 0)),       # beta: resident
            pl.BlockSpec((F, C_pad), lambda g: (0, 0)),   # w: resident
            pl.BlockSpec((1, C_pad), lambda g: (0, 0)),   # b: resident
        ],
        out_specs=pl.BlockSpec((b_tile, C_pad), lambda g: (g, 0)),
        compiler_params=pltpu.CompilerParams(
            dimension_semantics=("parallel",),   # B-tiles shard across v7x's 2 TCs
            vmem_limit_bytes=32 * 1024 * 1024,   # above v5e's 16 MiB scoped default
        ),
    )(x_t, gamma2, beta2, w_pad, b_pad)

    return out_pad[:B, :C]


if __name__ == "__main__":
    # Small shapes consistent with forward(x: B x N x F)
    B, N, F, C = 2, 8, 32, 4  # batch, seq, input_dim, n_classes

    key = jax.random.PRNGKey(0)
    kx, kw, kb = jax.random.split(key, 3)

    x = jax.random.normal(kx, (B, N, F), dtype=jnp.float32)

    # Deterministic parameter init (LayerNorm: gamma=1, beta=0; Linear: uniform-ish)
    gamma = jnp.ones((F,), jnp.float32)
    beta = jnp.zeros((F,), jnp.float32)
    bound = 1.0 / float(F) ** 0.5
    w = jax.random.uniform(kw, (F, C), minval=-bound, maxval=bound, dtype=jnp.float32)
    b = jax.random.uniform(kb, (C,), minval=-bound, maxval=bound, dtype=jnp.float32)

    out = median_classifier(x, gamma, beta, w, b)
    out = jax.block_until_ready(out)

    # Pure-JAX reference (lower median, matching torch.median)
    med_ref = jnp.sort(x, axis=1)[:, (N - 1) // 2, :]
    mean = med_ref.mean(-1, keepdims=True)
    var = ((med_ref - mean) ** 2).mean(-1, keepdims=True)
    ref = ((med_ref - mean) / jnp.sqrt(var + LN_EPS)) * gamma + beta
    ref = ref @ w + b

    assert out.shape == (B, C)
    assert jnp.allclose(out, ref, atol=1e-4, rtol=1e-4), (out, ref)
    print("KERNEL_OK")
</pallas_src>

<mosaic_0001>
module attributes {stable_mosaic.version = 11 : i64} {
  func.func @_median_classifier_kernel(%arg0: i32, %arg1: memref<8x8x32xf32, #tpu.memory_space<vmem>>, %arg2: memref<1x32xf32, #tpu.memory_space<vmem>>, %arg3: memref<1x32xf32, #tpu.memory_space<vmem>>, %arg4: memref<32x128xf32, #tpu.memory_space<vmem>>, %arg5: memref<1x128xf32, #tpu.memory_space<vmem>>, %arg6: memref<8x128xf32, #tpu.memory_space<vmem>>) attributes {dimension_semantics = [#tpu.dimension_semantics<parallel>], iteration_bounds = array<i64: 1>, scalar_prefetch = 0 : i64, scratch_operands = 0 : i64, tpu.core_type = #tpu.core_type<tc>, window_params = [{transform_indices = @transform_0, window_bounds = array<i64: 8, 8, 32>}, {pipeline_mode = #tpu.pipeline_mode<synchronous>, transform_indices = @transform_1, window_bounds = array<i64: 1, 32>}, {pipeline_mode = #tpu.pipeline_mode<synchronous>, transform_indices = @transform_2, window_bounds = array<i64: 1, 32>}, {pipeline_mode = #tpu.pipeline_mode<synchronous>, transform_indices = @transform_3, window_bounds = array<i64: 32, 128>}, {pipeline_mode = #tpu.pipeline_mode<synchronous>, transform_indices = @transform_4, window_bounds = array<i64: 1, 128>}, {transform_indices = @transform_5, window_bounds = array<i64: 8, 128>}]} {
    %c0 = arith.constant 0 : index
    %c0_0 = arith.constant 0 : index
    %0 = vector.load %arg2[%c0, %c0_0] : memref<1x32xf32, #tpu.memory_space<vmem>>, vector<1x32xf32>
    %c0_1 = arith.constant 0 : index
    %c0_2 = arith.constant 0 : index
    %1 = vector.load %arg3[%c0_1, %c0_2] : memref<1x32xf32, #tpu.memory_space<vmem>>, vector<1x32xf32>
    %c0_3 = arith.constant 0 : index
    %c0_4 = arith.constant 0 : index
    %2 = vector.load %arg4[%c0_3, %c0_4] : memref<32x128xf32, #tpu.memory_space<vmem>>, vector<32x128xf32>
    %c0_5 = arith.constant 0 : index
    %c0_6 = arith.constant 0 : index
    %3 = vector.load %arg5[%c0_5, %c0_6] : memref<1x128xf32, #tpu.memory_space<vmem>>, vector<1x128xf32>
    %c0_7 = arith.constant 0 : index
    %c0_8 = arith.constant 0 : index
    %c0_9 = arith.constant 0 : index
    %4 = vector.load %arg1[%c0_7, %c0_8, %c0_9] : memref<8x8x32xf32, #tpu.memory_space<vmem>>, vector<1x8x32xf32>
    %5 = vector.shape_cast %4 : vector<1x8x32xf32> to vector<8x32xf32>
    %c1 = arith.constant 1 : index
    %c0_10 = arith.constant 0 : index
    %c0_11 = arith.constant 0 : index
    %6 = vector.load %arg1[%c1, %c0_10, %c0_11] : memref<8x8x32xf32, #tpu.memory_space<vmem>>, vector<1x8x32xf32>
    %7 = vector.shape_cast %6 : vector<1x8x32xf32> to vector<8x32xf32>
    %c2 = arith.constant 2 : index
    %c0_12 = arith.constant 0 : index
    %c0_13 = arith.constant 0 : index
    %8 = vector.load %arg1[%c2, %c0_12, %c0_13] : memref<8x8x32xf32, #tpu.memory_space<vmem>>, vector<1x8x32xf32>
    %9 = vector.shape_cast %8 : vector<1x8x32xf32> to vector<8x32xf32>
    %c3 = arith.constant 3 : index
    %c0_14 = arith.constant 0 : index
    %c0_15 = arith.constant 0 : index
    %10 = vector.load %arg1[%c3, %c0_14, %c0_15] : memref<8x8x32xf32, #tpu.memory_space<vmem>>, vector<1x8x32xf32>
    %11 = vector.shape_cast %10 : vector<1x8x32xf32> to vector<8x32xf32>
    %c4 = arith.constant 4 : index
    %c0_16 = arith.constant 0 : index
    %c0_17 = arith.constant 0 : index
    %12 = vector.load %arg1[%c4, %c0_16, %c0_17] : memref<8x8x32xf32, #tpu.memory_space<vmem>>, vector<1x8x32xf32>
    %13 = vector.shape_cast %12 : vector<1x8x32xf32> to vector<8x32xf32>
    %c5 = arith.constant 5 : index
    %c0_18 = arith.constant 0 : index
    %c0_19 = arith.constant 0 : index
    %14 = vector.load %arg1[%c5, %c0_18, %c0_19] : memref<8x8x32xf32, #tpu.memory_space<vmem>>, vector<1x8x32xf32>
    %15 = vector.shape_cast %14 : vector<1x8x32xf32> to vector<8x32xf32>
    %c6 = arith.constant 6 : index
    %c0_20 = arith.constant 0 : index
    %c0_21 = arith.constant 0 : index
    %16 = vector.load %arg1[%c6, %c0_20, %c0_21] : memref<8x8x32xf32, #tpu.memory_space<vmem>>, vector<1x8x32xf32>
    %17 = vector.shape_cast %16 : vector<1x8x32xf32> to vector<8x32xf32>
    %c7 = arith.constant 7 : index
    %c0_22 = arith.constant 0 : index
    %c0_23 = arith.constant 0 : index
    %18 = vector.load %arg1[%c7, %c0_22, %c0_23] : memref<8x8x32xf32, #tpu.memory_space<vmem>>, vector<1x8x32xf32>
    %19 = vector.shape_cast %18 : vector<1x8x32xf32> to vector<8x32xf32>
    %20 = arith.minimumf %5, %7 : vector<8x32xf32>
    %21 = arith.maximumf %5, %7 : vector<8x32xf32>
    %22 = arith.minimumf %9, %11 : vector<8x32xf32>
    %23 = arith.maximumf %9, %11 : vector<8x32xf32>
    %24 = arith.minimumf %13, %15 : vector<8x32xf32>
    %25 = arith.maximumf %13, %15 : vector<8x32xf32>
    %26 = arith.minimumf %17, %19 : vector<8x32xf32>
    %27 = arith.maximumf %17, %19 : vector<8x32xf32>
    %28 = arith.minimumf %20, %22 : vector<8x32xf32>
    %29 = arith.maximumf %20, %22 : vector<8x32xf32>
    %30 = arith.minimumf %21, %23 : vector<8x32xf32>
    %31 = arith.maximumf %21, %23 : vector<8x32xf32>
    %32 = arith.minimumf %24, %26 : vector<8x32xf32>
    %33 = arith.maximumf %24, %26 : vector<8x32xf32>
    %34 = arith.minimumf %25, %27 : vector<8x32xf32>
    %35 = arith.maximumf %25, %27 : vector<8x32xf32>
    %36 = arith.minimumf %30, %29 : vector<8x32xf32>
    %37 = arith.maximumf %30, %29 : vector<8x32xf32>
    %38 = arith.minimumf %34, %33 : vector<8x32xf32>
    %39 = arith.maximumf %34, %33 : vector<8x32xf32>
    %40 = arith.maximumf %28, %32 : vector<8x32xf32>
    %41 = arith.maximumf %36, %38 : vector<8x32xf32>
    %42 = arith.minimumf %37, %39 : vector<8x32xf32>
    %43 = arith.minimumf %31, %35 : vector<8x32xf32>
    %44 = arith.maximumf %42, %40 : vector<8x32xf32>
    %45 = arith.minimumf %43, %41 : vector<8x32xf32>
    %46 = arith.minimumf %45, %44 : vector<8x32xf32>
    %cst = arith.constant dense<0.000000e+00> : vector<8xf32>
    %47 = vector.multi_reduction <add>, %46, %cst [1] : vector<8x32xf32> to vector<8xf32>
    %48 = vector.shape_cast %47 : vector<8xf32> to vector<8x1xf32>
    %cst_24 = arith.constant 3.200000e+01 : f32
    %49 = vector.broadcast %cst_24 : f32 to vector<8x1xf32>
    %50 = arith.divf %48, %49 : vector<8x1xf32>
    %51 = vector.broadcast %50 : vector<8x1xf32> to vector<8x32xf32>
    %52 = arith.subf %46, %51 : vector<8x32xf32>
    %53 = arith.mulf %52, %52 : vector<8x32xf32>
    %cst_25 = arith.constant dense<0.000000e+00> : vector<8xf32>
    %54 = vector.multi_reduction <add>, %53, %cst_25 [1] : vector<8x32xf32> to vector<8xf32>
    %55 = vector.shape_cast %54 : vector<8xf32> to vector<8x1xf32>
    %cst_26 = arith.constant 3.200000e+01 : f32
    %56 = vector.broadcast %cst_26 : f32 to vector<8x1xf32>
    %57 = arith.divf %55, %56 : vector<8x1xf32>
    %cst_27 = arith.constant 9.99999974E-6 : f32
    %58 = vector.broadcast %cst_27 : f32 to vector<8x1xf32>
    %59 = arith.addf %57, %58 : vector<8x1xf32>
    %60 = math.rsqrt %59 : vector<8x1xf32>
    %61 = vector.broadcast %60 : vector<8x1xf32> to vector<8x32xf32>
    %62 = arith.mulf %52, %61 : vector<8x32xf32>
    %63 = vector.broadcast %0 : vector<1x32xf32> to vector<8x32xf32>
    %64 = arith.mulf %62, %63 : vector<8x32xf32>
    %65 = vector.broadcast %1 : vector<1x32xf32> to vector<8x32xf32>
    %66 = arith.addf %64, %65 : vector<8x32xf32>
    %cst_28 = arith.constant dense<0.000000e+00> : vector<8x128xf32>
    %67 = tpu.matmul %66, %2, %cst_28 {dimension_numbers = #tpu.dot_dimension_numbers<[1], [0], [0], [1], [0, 0, 1, 1], [], []>} : vector<8x32xf32>, vector<32x128xf32>, vector<8x128xf32> -> vector<8x128xf32>
    %68 = vector.broadcast %3 : vector<1x128xf32> to vector<8x128xf32>
    %69 = arith.addf %67, %68 : vector<8x128xf32>
    %c0_29 = arith.constant 0 : index
    %c0_30 = arith.constant 0 : index
    %70 = vector.load %arg6[%c0_29, %c0_30] : memref<8x128xf32, #tpu.memory_space<vmem>>, vector<8x128xf32>
    tpu.vector_store %arg6[%c0_29, %c0_30], %69 {strides = array<i32>} : memref<8x128xf32, #tpu.memory_space<vmem>>, vector<8x128xf32>,
    return
  }
  func.func @transform_0(%arg0: i32) -> (i32, i32, i32) {
    %c0_i32 = arith.constant 0 : i32
    %c0_i32_0 = arith.constant 0 : i32
    %c0_i32_1 = arith.constant 0 : i32
    return %c0_i32, %arg0, %c0_i32_0 : i32, i32, i32
  }
  func.func @transform_1(%arg0: i32) -> (i32, i32) {
    %c0_i32 = arith.constant 0 : i32
    %c0_i32_0 = arith.constant 0 : i32
    %c0_i32_1 = arith.constant 0 : i32
    return %c0_i32, %c0_i32_0 : i32, i32
  }
  func.func @transform_2(%arg0: i32) -> (i32, i32) {
    %c0_i32 = arith.constant 0 : i32
    %c0_i32_0 = arith.constant 0 : i32
    %c0_i32_1 = arith.constant 0 : i32
    return %c0_i32, %c0_i32_0 : i32, i32
  }
  func.func @transform_3(%arg0: i32) -> (i32, i32) {
    %c0_i32 = arith.constant 0 : i32
    %c0_i32_0 = arith.constant 0 : i32
    %c0_i32_1 = arith.constant 0 : i32
    return %c0_i32, %c0_i32_0 : i32, i32
  }
  func.func @transform_4(%arg0: i32) -> (i32, i32) {
    %c0_i32 = arith.constant 0 : i32
    %c0_i32_0 = arith.constant 0 : i32
    %c0_i32_1 = arith.constant 0 : i32
    return %c0_i32, %c0_i32_0 : i32, i32
  }
  func.func @transform_5(%arg0: i32) -> (i32, i32) {
    %c0_i32 = arith.constant 0 : i32
    %c0_i32_0 = arith.constant 0 : i32
    return %arg0, %c0_i32 : i32, i32
  }
}

</mosaic_0001>

<llo_original>
// kernel: tpu_custom_call.1
$region0: #{tpu_custom_call.1}
  #allocation0 [shape = 'u32[]', space=smem, size = 0x4, offset = 0x4, fixed_abs, tag = 'smem constant byte address 0x4 - core index']
  #allocation1 [shape = 'u32[144,128]{1,0:T(1,128)}', space=vmem, size = 0x12000, scoped, tag = 'internal scratch']
  %s0 = inlined_call_operand.hbm [shape: f32[8,8,32], index: 0, kind: input, shape index: {}]
  %s1 = inlined_call_operand.vmem [shape: f32[1,32], index: 1, kind: input, shape index: {}]
  %s2 = inlined_call_operand.vmem [shape: f32[1,32], index: 2, kind: input, shape index: {}]
  %s3 = inlined_call_operand.hbm [shape: f32[32,128], index: 3, kind: input, shape index: {}]
  %s4 = inlined_call_operand.vmem [shape: f32[1,128], index: 4, kind: input, shape index: {}]
  %s5 = inlined_call_operand.hbm [shape: f32[8,128], index: 5, kind: output, shape index: {}]
  %s6 = sld [smem:[#allocation0]]
  $region38: #{tpu_custom_call.1} parent=0
    _
  %s8 = ssub.s32 1, %s6
  %s9 = scalar_select 0, %s8, %s6
  $region1: #{tpu_custom_call.1} parent=0
    #allocation2 [shape = 'u8[32768]{0}', space=vmem, size = 0x8000, scoped, tag = 'input window, operand 0, single buffered']
    #allocation3 [shape = 's32[1]{0}', space=sflag, size = 0x4, scoped, tag = 'scoped memory for tpu_custom_call.1']
    #allocation4 [shape = 's32[1]{0}', space=sflag, size = 0x4, scoped, tag = 'scoped memory for tpu_custom_call.1']
    #allocation5 [shape = 'u8[16384]{0}', space=vmem, size = 0x4000, scoped, tag = 'input window, operand 3, single buffered']
    #allocation6 [shape = 's32[1]{0}', space=sflag, size = 0x4, scoped, tag = 'scoped memory for tpu_custom_call.1']
    #allocation7 [shape = 'u8[4096]{0}', space=vmem, size = 0x1000, scoped, tag = 'output window, operand 0, single buffered']
    %10 = vsyncpa [#allocation3], 0
    %11 = vsyncpa [#allocation6], 0
    %12 = vsyncpa [#allocation4], 0
    // Predicated region
    $region2: #{tpu_custom_call.1} parent=1 // pred_check
      _
    $region3: #{tpu_custom_call.1} parent=1 // pred_check_branch
      %14 = sbr.rel (0) target = $region5
    $region4: #{tpu_custom_call.1} parent=1 // pred_region
      %s16 = ssub.s32 1024, 1024
      %17 = vsyncadd [#allocation3], %s16
      %s18 = sshll.u32 [#allocation2], 4
      %s19 = int_to_ptr.vmem [resolvable:$true] %s18
      %24 = dma.hbm_to_vmem [thread:$0]  %s0, 1024, %s19, [#allocation3], 128, 128, 8
    $region5: #{tpu_custom_call.1} parent=1 // pred_fallthru
      _
    // Predicated region
    $region6: #{tpu_custom_call.1} parent=1 // pred_check
      _
    $region7: #{tpu_custom_call.1} parent=1 // pred_check_branch
      %26 = sbr.rel (0) target = $region9
    $region8: #{tpu_custom_call.1} parent=1 // pred_region
      _
    $region9: #{tpu_custom_call.1} parent=1 // pred_fallthru
      _
    // Predicated region
    $region10: #{tpu_custom_call.1} parent=1 // pred_check
      _
    $region11: #{tpu_custom_call.1} parent=1 // pred_check_branch
      %28 = sbr.rel (0) target = $region13
    $region12: #{tpu_custom_call.1} parent=1 // pred_region
      _
    $region13: #{tpu_custom_call.1} parent=1 // pred_fallthru
      _
    // Predicated region
    $region14: #{tpu_custom_call.1} parent=1 // pred_check
      _
    $region15: #{tpu_custom_call.1} parent=1 // pred_check_branch
      %30 = sbr.rel (0) target = $region17
    $region16: #{tpu_custom_call.1} parent=1 // pred_region
      %s32 = ssub.s32 512, 512
      %33 = vsyncadd [#allocation6], %s32
      %s34 = sshll.u32 [#allocation5], 4
      %s35 = int_to_ptr.vmem [resolvable:$true] %s34
      %40 = dma.hbm_to_vmem [thread:$0]  %s3, 512, %s35, [#allocation6], 128, 128, 8
    $region17: #{tpu_custom_call.1} parent=1 // pred_fallthru
      _
    // Predicated region
    $region18: #{tpu_custom_call.1} parent=1 // pred_check
      _
    $region19: #{tpu_custom_call.1} parent=1 // pred_check_branch
      %42 = sbr.rel (0) target = $region21
    $region20: #{tpu_custom_call.1} parent=1 // pred_region
      _
    $region21: #{tpu_custom_call.1} parent=1 // pred_fallthru
      _
    // Predicated region
    $region22: #{tpu_custom_call.1} parent=1 // pred_check
      _
    $region23: #{tpu_custom_call.1} parent=1 // pred_check_branch
      %44 = sbr.rel (0) target = $region25
    $region24: #{tpu_custom_call.1} parent=1 // pred_region
      %45 = dma.done [#allocation3], 1024
    $region25: #{tpu_custom_call.1} parent=1 // pred_fallthru
      _
    // Predicated region
    $region26: #{tpu_custom_call.1} parent=1 // pred_check
      _
    $region27: #{tpu_custom_call.1} parent=1 // pred_check_branch
      %47 = sbr.rel (0) target = $region29
    $region28: #{tpu_custom_call.1} parent=1 // pred_region
      %48 = dma.done [#allocation6], 512
    $region29: #{tpu_custom_call.1} parent=1 // pred_fallthru
      _
    %v49 = vld [vmem:[%s1] sm:$0x1]
    %v50 = vld [vmem:[%s2] sm:$0x1]
    %v51 = vld [vmem:[#allocation5] sm:$0xff]
    %v52 = vld [vmem:[#allocation5 + $0x8] sm:$0xff]
    %v53 = vld [vmem:[#allocation5 + $0x10] sm:$0xff]
    %v54 = vld [vmem:[#allocation5 + $0x18] sm:$0xff]
    %v55 = vld [vmem:[%s4] sm:$0x1]
    %v56 = vld [vmem:[#allocation2] sm:$0xff]
    %s57 = scalar_lea.vmem [#allocation2], 8
    %v58 = vld [vmem:[%s57] sm:$0xff]
    %s59 = scalar_lea.vmem [#allocation2], 16
    %v60 = vld [vmem:[%s59] sm:$0xff]
    %s61 = scalar_lea.vmem [#allocation2], 24
    %v62 = vld [vmem:[%s61] sm:$0xff]
    %s63 = scalar_lea.vmem [#allocation2], 32
    %v64 = vld [vmem:[%s63] sm:$0xff]
    %s65 = scalar_lea.vmem [#allocation2], 40
    %v66 = vld [vmem:[%s65] sm:$0xff]
    %s67 = scalar_lea.vmem [#allocation2], 48
    %v68 = vld [vmem:[%s67] sm:$0xff]
    %s69 = scalar_lea.vmem [#allocation2], 56
    %v70 = vld [vmem:[%s69] sm:$0xff]
    %v71 = vmin.f32 %v56, %v58
    %v72 = vmax.f32 %v56, %v58
    %v73 = vmin.f32 %v60, %v62
    %v74 = vmax.f32 %v60, %v62
    %v75 = vmin.f32 %v64, %v66
    %v76 = vmax.f32 %v64, %v66
    %v77 = vmin.f32 %v68, %v70
    %v78 = vmax.f32 %v68, %v70
    %v79 = vmin.f32 %v71, %v73
    %v80 = vmax.f32 %v71, %v73
    %v81 = vmin.f32 %v72, %v74
    %v82 = vmax.f32 %v72, %v74
    %v83 = vmin.f32 %v75, %v77
    %v84 = vmax.f32 %v75, %v77
    %v85 = vmin.f32 %v76, %v78
    %v86 = vmax.f32 %v76, %v78
    %v87 = vmin.f32 %v81, %v80
    %v88 = vmax.f32 %v81, %v80
    %v89 = vmin.f32 %v85, %v84
    %v90 = vmax.f32 %v85, %v84
    %v91 = vmax.f32 %v79, %v83
    %v92 = vmax.f32 %v87, %v89
    %v93 = vmin.f32 %v88, %v90
    %v94 = vmin.f32 %v82, %v86
    %v95 = vmax.f32 %v93, %v91
    %v96 = vmin.f32 %v94, %v92
    %v97 = vmin.f32 %v96, %v95
    %vm98 = vcmask 261120
    %v99 = vsel %vm98, %v97, 0.0
    %100 = vadd.xlane.f32.xlu0 %v99
    %v101 = vpop.xlane.xlu0 %100
    %v102 = vrcp.pop 32.0
    %v103 = vmul.f32 %v101, %v102
    %v104 = vsub.f32 %v97, %v103
    %v105 = vmul.f32 %v104, %v104
    %v106 = vsel %vm98, %v105, 0.0
    %107 = vadd.xlane.f32.xlu0 %v106
    %v108 = vpop.xlane.xlu0 %107
    %v109 = vmul.f32 %v108, %v102
    %v110 = vadd.f32 %v109, 1e-05
    %v111 = vrsqrt.pop %v110
    %v112 = vmul.f32 %v104, %v111
    %v114 = vlaneseq
    %v115 = vshrl.u32 %v114, 7
    %v116 = vsub.s32 0, %v115
    %v117 = vrot.slane %v49, %v116
    %v119 = vmul.f32 %v112, %v117
    %v121 = vlaneseq
    %v122 = vshrl.u32 %v121, 7
    %v123 = vsub.s32 0, %v122
    %v124 = vrot.slane %v50, %v123
    %v126 = vadd.f32 %v119, %v124
    %v128 = vlaneseq
    %v129 = vshrl.u32 %v128, 7
    %v130 = vsub.s32 0, %v129
    %v131 = vrot.slane %v55, %v130
    %v134 = vsel %vm98, %v126, 0
    %136 = vmatprep.subr.mxu0 0.0
    %137 = vmatpush1.msra.mxu0 0.0
    %138 = vmatprep.subr.mxu0 0.0
    %139 = vmatpush1.msra.mxu0 0.0
    %140 = vmatprep.subr.mxu0 0.0
    %141 = vmatpush1.msra.mxu0 0.0
    %142 = vmatprep.subr.mxu0 0.0
    %143 = vmatpush1.msra.mxu0 0.0
    %144 = vmatprep.subr.mxu0 0.0
    %145 = vmatpush1.msra.mxu0 0.0
    %146 = vmatprep.subr.mxu0 0.0
    %147 = vmatpush1.msra.mxu0 0.0
    %148 = vmatprep.subr.mxu0 0.0
    %149 = vmatpush1.msra.mxu0 0.0
    %150 = vmatprep.subr.mxu0 0.0
    %151 = vmatpush1.msra.mxu0 0.0
    %152 = vmatprep.subr.mxu0 0.0
    %153 = vmatpush1.msra.mxu0 0.0
    %154 = vmatprep.subr.mxu0 0.0
    %155 = vmatpush1.msra.mxu0 0.0
    %156 = vmatprep.subr.mxu0 0.0
    %157 = vmatpush1.msra.mxu0 0.0
    %158 = vmatprep.subr.mxu0 0.0
    %159 = vmatpush1.msra.mxu0 0.0
    %160 = vmatprep.subr.mxu0 0.0
    %161 = vmatpush1.msra.mxu0 %v54
    %162 = vmatprep.subr.mxu0 0.0
    %163 = vmatpush1.msra.mxu0 %v53
    %164 = vmatprep.subr.mxu0 0.0
    %165 = vmatpush1.msra.mxu0 %v52
    %166 = vmatprep.subr.mxu0 0.0
    %167 = vmatpush1.msra.mxu0 %v51
    %168 = vmatprep.subr.mxu0 0.0
    %169 = vmatpush2.msra.mxu0 0.0
    %170 = vmatprep.subr.mxu0 0.0
    %171 = vmatpush2.msra.mxu0 0.0
    %172 = vmatprep.subr.mxu0 0.0
    %173 = vmatpush2.msra.mxu0 0.0
    %174 = vmatprep.subr.mxu0 0.0
    %175 = vmatpush2.msra.mxu0 0.0
    %176 = vmatprep.subr.mxu0 0.0
    %177 = vmatpush2.msra.mxu0 0.0
    %178 = vmatprep.subr.mxu0 0.0
    %179 = vmatpush2.msra.mxu0 0.0
    %180 = vmatprep.subr.mxu0 0.0
    %181 = vmatpush2.msra.mxu0 0.0
    %182 = vmatprep.subr.mxu0 0.0
    %183 = vmatpush2.msra.mxu0 0.0
    %184 = vmatprep.subr.mxu0 0.0
    %185 = vmatpush2.msra.mxu0 0.0
    %186 = vmatprep.subr.mxu0 0.0
    %187 = vmatpush2.msra.mxu0 0.0
    %188 = vmatprep.subr.mxu0 0.0
    %189 = vmatpush2.msra.mxu0 0.0
    %190 = vmatprep.subr.mxu0 0.0
    %191 = vmatpush2.msra.mxu0 0.0
    %192 = vmatprep.subr.mxu0 0.0
    %193 = vmatpush2.msra.mxu0 0.0
    %194 = vmatprep.subr.mxu0 0.0
    %195 = vmatpush2.msra.mxu0 0.0
    %196 = vmatprep.subr.mxu0 0.0
    %197 = vmatpush2.msra.mxu0 0.0
    %198 = vmatprep.subr.mxu0 0.0
    %199 = vmatpush2.msra.mxu0 0.0
    %200 = vmatprep.mubr.f32.mxu0 0.0
    %201 = vmatmul.mubr.f32.gmra.mxu0 %v134
    %v202 = vpop.f32.mrf.mxu0
    %v203 = vadd.f32 %v131, %v202
    %v204 = vpop.f32.mrf.mxu0
    %205 = vdwg.mxu0
    %206 = vst [vmem:[#allocation7] sm:$0xff] %v203
    // Predicated region
    $region30: #{tpu_custom_call.1} parent=1 // pred_check
      _
    $region31: #{tpu_custom_call.1} parent=1 // pred_check_branch
      %208 = sbr.rel (0) target = $region33
    $region32: #{tpu_custom_call.1} parent=1 // pred_region
      %s210 = ssub.s32 128, 128
      %211 = vsyncadd [#allocation4], %s210
      %s213 = sshll.u32 [#allocation7], 4
      %s214 = int_to_ptr.vmem [resolvable:$true] %s213
      %216 = dma.vmem_to_hbm [thread:$0]  %s214, 128, %s5, [#allocation4]
    $region33: #{tpu_custom_call.1} parent=1 // pred_fallthru
      _
    // Predicated region
    $region34: #{tpu_custom_call.1} parent=1 // pred_check
      _
    $region35: #{tpu_custom_call.1} parent=1 // pred_check_branch
      %218 = sbr.rel (0) target = $region37
    $region36: #{tpu_custom_call.1} parent=1 // pred_region
      %219 = dma.done [#allocation4], 128
    $region37: #{tpu_custom_call.1} parent=1 // pred_fallthru
      _
    %220 = vsyncpa [#allocation3], 1
    %221 = vsyncpa [#allocation6], 1
    %222 = vsyncpa [#allocation4], 1

</llo_original>
